<compile_context>
chip_gen: v7x
topology: tpu7x:2x2x1
jax: 0.10.0
libtpu: 0.0.40
codegen_flags: <defaults>
</compile_context>

<pallas_src>
import jax
import jax.numpy as jnp
from jax import lax
from jax.experimental import pallas as pl
from jax.experimental.pallas import tpu as pltpu


def _round_up(n, m):
    return ((n + m - 1) // m) * m


def _choose_batch_tile(batch, row_bytes, target_bytes=4 * 1024 * 1024):
    """~4 MiB of x per grid step, multiple of 8 rows, >=2 tiles when possible."""
    tb = max(1, target_bytes // max(row_bytes, 1))
    tb = min(tb, batch)
    tb = _round_up(tb, 8)
    if tb >= batch and batch >= 16:
        # split so a v7x chip can shard the (parallel) batch axis over both TCs
        tb = _round_up((batch + 1) // 2, 8)
    return tb


def _f2ecog_kernel(x_ref, w1m_ref, w2_ref, b1_ref, b2_ref, o_ref):
    # x_ref  : (TB, K*D3)   lane-dense batch tile of the flattened input
    # w1m_ref: (K*D3, D3)   expanded f1 weight (resident: constant index map)
    # w2_ref : (1, D3)      f2 weight
    # b1_ref : (1,) SMEM    f1 bias
    # b2_ref : (1,) SMEM    f2 bias
    # o_ref  : (1, 1, TB)   lane-dense per-tile output (one lane per batch row)
    q = jnp.dot(x_ref[...], w1m_ref[...], preferred_element_type=jnp.float32)
    q = jnp.clip(q + b1_ref[0], 0.0, 6.0)                      # ReLU6, (TB, D3)
    # f2 as (1, D3) contracted with (TB, D3) on D3 -> (1, TB): lane-dense store.
    out = lax.dot_general(
        w2_ref[...], q, (((1,), (1,)), ((), ())),
        preferred_element_type=jnp.float32) + b2_ref[0]        # (1, TB)
    o_ref[...] = out[None].astype(o_ref.dtype)


def fetures2ecog_trans(x, w1, b1, w2, b2):
    """x: (B, D1, D2, D3) float32. Returns (w=0, out of shape (B, 1))."""
    B, D1, D2, D3 = x.shape
    K = D1 * D2
    KD = K * D3

    # Free, contiguous reshape: x2[b, k*D3 + d3] == x[b, d1, d2, d3].
    x2 = x.reshape(B, KD)

    # W1mat[k*D3 + d3, d] = w1[k] * (d3 == d): one matmul does the f1 weighting
    # and the segmented reduction over K while keeping the big tile 2-D.
    w1mat = (w1[:, None, None] *
             jnp.eye(D3, dtype=jnp.float32)[None, :, :]).reshape(KD, D3)
    w2_row = w2.reshape(1, D3).astype(jnp.float32)
    b1_s = b1.reshape(1).astype(jnp.float32)
    b2_s = b2.reshape(1).astype(jnp.float32)

    TB = _choose_batch_tile(B, KD * 4)
    NT = pl.cdiv(B, TB)

    out_tiles = pl.pallas_call(
        _f2ecog_kernel,
        out_shape=jax.ShapeDtypeStruct((NT, 1, TB), jnp.float32),
        grid_spec=pltpu.PrefetchScalarGridSpec(
            num_scalar_prefetch=0,
            grid=(NT,),
            in_specs=[
                pl.BlockSpec((TB, KD), lambda i: (i, 0)),           # x batch tile
                pl.BlockSpec((KD, D3), lambda i: (0, 0)),           # W1mat (resident)
                pl.BlockSpec((1, D3), lambda i: (0, 0)),            # w2 (resident)
                pl.BlockSpec(memory_space=pltpu.MemorySpace.SMEM),  # b1 scalar
                pl.BlockSpec(memory_space=pltpu.MemorySpace.SMEM),  # b2 scalar
            ],
            out_specs=pl.BlockSpec((1, 1, TB), lambda i: (i, 0, 0)),
        ),
        compiler_params=pltpu.CompilerParams(
            dimension_semantics=("parallel",),
            vmem_limit_bytes=48 * 1024 * 1024,   # headroom on v5e/v6e; < v7x 64 MiB
        ),
    )(x2, w1mat, w2_row, b1_s, b2_s)

    # Drop the boundary-masked tail lanes -> (B, 1).
    out = out_tiles.reshape(-1)[:B].reshape(B, 1)
    # TODO(synk): optional bf16 cast of x2 would halve HBM traffic but changes numerics.
    w_attn = 0   # self.attention / self.b are never applied in the reference forward
    return w_attn, out


def _reference(x, w1, b1, w2, b2):
    B, D1, D2, D3 = x.shape
    xf = x.reshape(B, D1 * D2, D3)
    q = jnp.einsum("bkd,k->bd", xf, w1) + b1               # (B, D3)
    q = jnp.clip(q, 0.0, 6.0)
    return jnp.einsum("bd,d->b", q, w2)[:, None] + b2      # (B, 1)


if __name__ == "__main__":
    # Small shapes consistent with the module: features_dim = (B, D1, D2, D3)
    B, D1, D2, D3 = 2, 4, 4, 16
    K = D1 * D2

    key = jax.random.PRNGKey(0)
    k_x, k_w1, k_b1, k_w2, k_b2 = jax.random.split(key, 5)

    x = jax.random.normal(k_x, (B, D1, D2, D3), dtype=jnp.float32)
    # Parameter shapes match torch Linear(K, 1) / Linear(D3, 1)
    w1 = jax.random.normal(k_w1, (K,), dtype=jnp.float32) * 0.1
    b1 = jax.random.normal(k_b1, (1,), dtype=jnp.float32) * 0.1
    w2 = jax.random.normal(k_w2, (D3,), dtype=jnp.float32) * 0.1
    b2 = jax.random.normal(k_b2, (1,), dtype=jnp.float32) * 0.1

    w_attn, out = fetures2ecog_trans(x, w1, b1, w2, b2)
    out = jax.block_until_ready(out)

    ref = _reference(x, w1, b1, w2, b2)
    assert out.shape == (B, 1)
    assert w_attn == 0
    assert jnp.allclose(out, ref, atol=1e-4, rtol=1e-4), (out, ref)

    print("KERNEL_OK")
</pallas_src>

<mosaic_0001>
module attributes {stable_mosaic.version = 11 : i64} {
  func.func @_f2ecog_kernel(%arg0: i32, %arg1: memref<8x256xf32, #tpu.memory_space<vmem>>, %arg2: memref<256x16xf32, #tpu.memory_space<vmem>>, %arg3: memref<1x16xf32, #tpu.memory_space<vmem>>, %arg4: memref<1xf32, #tpu.memory_space<smem>>, %arg5: memref<1xf32, #tpu.memory_space<smem>>, %arg6: memref<1x1x8xf32, #tpu.memory_space<vmem>>) attributes {dimension_semantics = [#tpu.dimension_semantics<parallel>], iteration_bounds = array<i64: 1>, scalar_prefetch = 0 : i64, scratch_operands = 0 : i64, tpu.core_type = #tpu.core_type<tc>, window_params = [{transform_indices = @transform_0, window_bounds = array<i64: 8, 256>}, {pipeline_mode = #tpu.pipeline_mode<synchronous>, transform_indices = @transform_1, window_bounds = array<i64: 256, 16>}, {pipeline_mode = #tpu.pipeline_mode<synchronous>, transform_indices = @transform_2, window_bounds = array<i64: 1, 16>}, {transform_indices = @transform_3, window_bounds = array<i64: 1>}, {transform_indices = @transform_4, window_bounds = array<i64: 1>}, {transform_indices = @transform_5, window_bounds = array<i64: 1, 1, 8>}]} {
    %c0 = arith.constant 0 : index
    %c0_0 = arith.constant 0 : index
    %0 = vector.load %arg1[%c0, %c0_0] : memref<8x256xf32, #tpu.memory_space<vmem>>, vector<8x256xf32>
    %c0_1 = arith.constant 0 : index
    %c0_2 = arith.constant 0 : index
    %1 = vector.load %arg2[%c0_1, %c0_2] : memref<256x16xf32, #tpu.memory_space<vmem>>, vector<256x16xf32>
    %cst = arith.constant dense<0.000000e+00> : vector<8x16xf32>
    %2 = tpu.matmul %0, %1, %cst {dimension_numbers = #tpu.dot_dimension_numbers<[1], [0], [0], [1], [0, 0, 1, 1], [], []>} : vector<8x256xf32>, vector<256x16xf32>, vector<8x16xf32> -> vector<8x16xf32>
    %c0_3 = arith.constant 0 : index
    %3 = memref.load %arg4[%c0_3] : memref<1xf32, #tpu.memory_space<smem>>
    %4 = vector.broadcast %3 : f32 to vector<8x16xf32>
    %5 = arith.addf %2, %4 : vector<8x16xf32>
    %cst_4 = arith.constant 0.000000e+00 : f32
    %cst_5 = arith.constant 6.000000e+00 : f32
    %6 = vector.broadcast %cst_4 : f32 to vector<8x16xf32>
    %7 = arith.maximumf %6, %5 : vector<8x16xf32>
    %8 = vector.broadcast %cst_5 : f32 to vector<8x16xf32>
    %9 = arith.minimumf %8, %7 : vector<8x16xf32>
    %c0_6 = arith.constant 0 : index
    %c0_7 = arith.constant 0 : index
    %10 = vector.load %arg3[%c0_6, %c0_7] : memref<1x16xf32, #tpu.memory_space<vmem>>, vector<1x16xf32>
    %cst_8 = arith.constant dense<0.000000e+00> : vector<1x8xf32>
    %11 = tpu.matmul %10, %9, %cst_8 {dimension_numbers = #tpu.dot_dimension_numbers<[1], [1], [0], [0], [0, 0, 1, 0], [], []>} : vector<1x16xf32>, vector<8x16xf32>, vector<1x8xf32> -> vector<1x8xf32>
    %c0_9 = arith.constant 0 : index
    %12 = memref.load %arg5[%c0_9] : memref<1xf32, #tpu.memory_space<smem>>
    %13 = vector.broadcast %12 : f32 to vector<1x8xf32>
    %14 = arith.addf %11, %13 : vector<1x8xf32>
    %15 = vector.shape_cast %14 : vector<1x8xf32> to vector<1x1x8xf32>
    %c0_10 = arith.constant 0 : index
    %c0_11 = arith.constant 0 : index
    %c0_12 = arith.constant 0 : index
    %16 = vector.load %arg6[%c0_10, %c0_11, %c0_12] : memref<1x1x8xf32, #tpu.memory_space<vmem>>, vector<1x1x8xf32>
    tpu.vector_store %arg6[%c0_10, %c0_11, %c0_12], %15 {strides = array<i32>} : memref<1x1x8xf32, #tpu.memory_space<vmem>>, vector<1x1x8xf32>,
    return
  }
  func.func @transform_0(%arg0: i32) -> (i32, i32) {
    %c0_i32 = arith.constant 0 : i32
    %c0_i32_0 = arith.constant 0 : i32
    return %arg0, %c0_i32 : i32, i32
  }
  func.func @transform_1(%arg0: i32) -> (i32, i32) {
    %c0_i32 = arith.constant 0 : i32
    %c0_i32_0 = arith.constant 0 : i32
    %c0_i32_1 = arith.constant 0 : i32
    return %c0_i32, %c0_i32_0 : i32, i32
  }
  func.func @transform_2(%arg0: i32) -> (i32, i32) {
    %c0_i32 = arith.constant 0 : i32
    %c0_i32_0 = arith.constant 0 : i32
    %c0_i32_1 = arith.constant 0 : i32
    return %c0_i32, %c0_i32_0 : i32, i32
  }
  func.func @transform_3(%arg0: i32) -> i32 {
    %c0_i32 = arith.constant 0 : i32
    %c0_i32_0 = arith.constant 0 : i32
    return %c0_i32 : i32
  }
  func.func @transform_4(%arg0: i32) -> i32 {
    %c0_i32 = arith.constant 0 : i32
    %c0_i32_0 = arith.constant 0 : i32
    return %c0_i32 : i32
  }
  func.func @transform_5(%arg0: i32) -> (i32, i32, i32) {
    %c0_i32 = arith.constant 0 : i32
    %c0_i32_0 = arith.constant 0 : i32
    %c0_i32_1 = arith.constant 0 : i32
    return %arg0, %c0_i32, %c0_i32_0 : i32, i32, i32
  }
}

</mosaic_0001>

<llo_original>
// kernel: tpu_custom_call.1
$region0: #{tpu_custom_call.1}
  #allocation0 [shape = 'u32[]', space=smem, size = 0x4, offset = 0x4, fixed_abs, tag = 'smem constant byte address 0x4 - core index']
  #allocation1 [shape = 'u32[144,128]{1,0:T(1,128)}', space=vmem, size = 0x12000, scoped, tag = 'internal scratch']
  #allocation2 [shape = 'f32[1]{0:T(128)S(6)}', space=smem, size = 0x200, scoped, tag = 'scoped memory for tpu_custom_call.1']
  #allocation3 [shape = 'f32[1]{0:T(128)S(6)}', space=smem, size = 0x200, scoped, tag = 'scoped memory for tpu_custom_call.1']
  %s0 = inlined_call_operand.vmem [shape: f32[2,256], index: 0, kind: input, shape index: {}]
  %s1 = inlined_call_operand.vmem [shape: f32[256,16], index: 1, kind: input, shape index: {}]
  %s2 = inlined_call_operand.vmem [shape: f32[1,16], index: 2, kind: input, shape index: {}]
  %s3 = inlined_call_operand.<no memory space> [shape: f32[1], index: 3, kind: input, shape index: {}]
  %s4 = inlined_call_operand.<no memory space> [shape: f32[1], index: 4, kind: input, shape index: {}]
  %s5 = inlined_call_operand.hbm [shape: f32[1,1,8], index: 5, kind: output, shape index: {}]
  %s6 = sld [smem:[#allocation0]]
  $region30: #{tpu_custom_call.1} parent=0
    _
  %s8 = ssub.s32 1, %s6
  %s9 = scalar_select 0, %s8, %s6
  %10 = sst [smem:[#allocation2]] %s3
  %11 = sst [smem:[#allocation3]] %s4
  $region1: #{tpu_custom_call.1} parent=0
    #allocation4 [shape = 'u8[512]{0}', space=vmem, size = 0x400, scoped, tag = 'output window, operand 0, single buffered']
    #allocation5 [shape = 's32[1]{0}', space=sflag, size = 0x4, scoped, tag = 'scoped memory for tpu_custom_call.1']
    %12 = vsyncpa [#allocation5], 0
    // Predicated region
    $region2: #{tpu_custom_call.1} parent=1 // pred_check
      _
    $region3: #{tpu_custom_call.1} parent=1 // pred_check_branch
      %14 = sbr.rel (0) target = $region5
    $region4: #{tpu_custom_call.1} parent=1 // pred_region
      _
    $region5: #{tpu_custom_call.1} parent=1 // pred_fallthru
      _
    // Predicated region
    $region6: #{tpu_custom_call.1} parent=1 // pred_check
      _
    $region7: #{tpu_custom_call.1} parent=1 // pred_check_branch
      %16 = sbr.rel (0) target = $region9
    $region8: #{tpu_custom_call.1} parent=1 // pred_region
      _
    $region9: #{tpu_custom_call.1} parent=1 // pred_fallthru
      _
    // Predicated region
    $region10: #{tpu_custom_call.1} parent=1 // pred_check
      _
    $region11: #{tpu_custom_call.1} parent=1 // pred_check_branch
      %18 = sbr.rel (0) target = $region13
    $region12: #{tpu_custom_call.1} parent=1 // pred_region
      _
    $region13: #{tpu_custom_call.1} parent=1 // pred_fallthru
      _
    // Predicated region
    $region14: #{tpu_custom_call.1} parent=1 // pred_check
      _
    $region15: #{tpu_custom_call.1} parent=1 // pred_check_branch
      %20 = sbr.rel (0) target = $region17
    $region16: #{tpu_custom_call.1} parent=1 // pred_region
      _
    $region17: #{tpu_custom_call.1} parent=1 // pred_fallthru
      _
    // Predicated region
    $region18: #{tpu_custom_call.1} parent=1 // pred_check
      _
    $region19: #{tpu_custom_call.1} parent=1 // pred_check_branch
      %22 = sbr.rel (0) target = $region21
    $region20: #{tpu_custom_call.1} parent=1 // pred_region
      _
    $region21: #{tpu_custom_call.1} parent=1 // pred_fallthru
      _
    %v23 = vld [vmem:[%s0] sm:$0xf]
    %v24 = vld [vmem:[%s0 + $0x4] sm:$0xf]
    %v25 = vld [vmem:[%s0 + $0x8] sm:$0xf]
    %v26 = vld [vmem:[%s0 + $0xc] sm:$0xf]
    %v27 = vld [vmem:[%s1] sm:$0xff]
    %v28 = vld [vmem:[%s1 + $0x8] sm:$0xff]
    %v29 = vld [vmem:[%s1 + $0x10] sm:$0xff]
    %v30 = vld [vmem:[%s1 + $0x18] sm:$0xff]
    %v31 = vld [vmem:[%s1 + $0x20] sm:$0xff]
    %v32 = vld [vmem:[%s1 + $0x28] sm:$0xff]
    %v33 = vld [vmem:[%s1 + $0x30] sm:$0xff]
    %v34 = vld [vmem:[%s1 + $0x38] sm:$0xff]
    %v35 = vld [vmem:[%s1 + $0x40] sm:$0xff]
    %v36 = vld [vmem:[%s1 + $0x48] sm:$0xff]
    %v37 = vld [vmem:[%s1 + $0x50] sm:$0xff]
    %v38 = vld [vmem:[%s1 + $0x58] sm:$0xff]
    %v39 = vld [vmem:[%s1 + $0x60] sm:$0xff]
    %v40 = vld [vmem:[%s1 + $0x68] sm:$0xff]
    %v41 = vld [vmem:[%s1 + $0x70] sm:$0xff]
    %v42 = vld [vmem:[%s1 + $0x78] sm:$0xff]
    %v43 = vld [vmem:[%s1 + $0x80] sm:$0xff]
    %v44 = vld [vmem:[%s1 + $0x88] sm:$0xff]
    %v45 = vld [vmem:[%s1 + $0x90] sm:$0xff]
    %v46 = vld [vmem:[%s1 + $0x98] sm:$0xff]
    %v47 = vld [vmem:[%s1 + $0xa0] sm:$0xff]
    %v48 = vld [vmem:[%s1 + $0xa8] sm:$0xff]
    %v49 = vld [vmem:[%s1 + $0xb0] sm:$0xff]
    %v50 = vld [vmem:[%s1 + $0xb8] sm:$0xff]
    %v51 = vld [vmem:[%s1 + $0xc0] sm:$0xff]
    %v52 = vld [vmem:[%s1 + $0xc8] sm:$0xff]
    %v53 = vld [vmem:[%s1 + $0xd0] sm:$0xff]
    %v54 = vld [vmem:[%s1 + $0xd8] sm:$0xff]
    %v55 = vld [vmem:[%s1 + $0xe0] sm:$0xff]
    %v56 = vld [vmem:[%s1 + $0xe8] sm:$0xff]
    %v57 = vld [vmem:[%s1 + $0xf0] sm:$0xff]
    %v58 = vld [vmem:[%s1 + $0xf8] sm:$0xff]
    %s59 = sld [smem:[#allocation2]]
    %v60 = vstv %s59
    %v65 = vcombine.low %v23, %v24
    %v66 = vcombine.low %v25, %v26
    %v68 = vunpack.c.l.s4 1983009808
    %v69 = vunpack.c.0.s8 %v68
    %v70 = vlaneseq
    %v71 = vshrl.u32 %v70, 7
    %v72 = vsub.s32 %v69, %v71
    %v73 = vrot.slane %v65, %v72
    %v75 = vunpack.c.l.s4 1983009808
    %v76 = vunpack.c.0.s8 %v75
    %v77 = vlaneseq
    %v78 = vshrl.u32 %v77, 7
    %v79 = vsub.s32 %v76, %v78
    %v80 = vrot.slane %v66, %v79
    %v81 = vcombine.low %v73, %v80
    %v82 = vcombine.high %v73, %v80
    %85 = vmatprep.subr.mxu0 0.0
    %86 = vmatpush1.msra.mxu0 %v27
    %87 = vmatprep.subr.mxu0 0.0
    %88 = vmatpush1.msra.mxu0 %v28
    %89 = vmatprep.subr.mxu0 0.0
    %90 = vmatpush1.msra.mxu0 %v29
    %91 = vmatprep.subr.mxu0 0.0
    %92 = vmatpush1.msra.mxu0 %v30
    %93 = vmatprep.subr.mxu0 0.0
    %94 = vmatpush1.msra.mxu0 %v31
    %95 = vmatprep.subr.mxu0 0.0
    %96 = vmatpush1.msra.mxu0 %v32
    %97 = vmatprep.subr.mxu0 0.0
    %98 = vmatpush1.msra.mxu0 %v33
    %99 = vmatprep.subr.mxu0 0.0
    %100 = vmatpush1.msra.mxu0 %v34
    %101 = vmatprep.subr.mxu0 0.0
    %102 = vmatpush1.msra.mxu0 %v35
    %103 = vmatprep.subr.mxu0 0.0
    %104 = vmatpush1.msra.mxu0 %v36
    %105 = vmatprep.subr.mxu0 0.0
    %106 = vmatpush1.msra.mxu0 %v37
    %107 = vmatprep.subr.mxu0 0.0
    %108 = vmatpush1.msra.mxu0 %v38
    %109 = vmatprep.subr.mxu0 0.0
    %110 = vmatpush1.msra.mxu0 %v39
    %111 = vmatprep.subr.mxu0 0.0
    %112 = vmatpush1.msra.mxu0 %v40
    %113 = vmatprep.subr.mxu0 0.0
    %114 = vmatpush1.msra.mxu0 %v41
    %115 = vmatprep.subr.mxu0 0.0
    %116 = vmatpush1.msra.mxu0 %v42
    %117 = vmatprep.subr.mxu0 0.0
    %118 = vmatpush1.msra.mxu0 %v43
    %119 = vmatprep.subr.mxu0 0.0
    %120 = vmatpush1.msra.mxu0 %v44
    %121 = vmatprep.subr.mxu0 0.0
    %122 = vmatpush1.msra.mxu0 %v45
    %123 = vmatprep.subr.mxu0 0.0
    %124 = vmatpush1.msra.mxu0 %v46
    %125 = vmatprep.subr.mxu0 0.0
    %126 = vmatpush1.msra.mxu0 %v47
    %127 = vmatprep.subr.mxu0 0.0
    %128 = vmatpush1.msra.mxu0 %v48
    %129 = vmatprep.subr.mxu0 0.0
    %130 = vmatpush1.msra.mxu0 %v49
    %131 = vmatprep.subr.mxu0 0.0
    %132 = vmatpush1.msra.mxu0 %v50
    %133 = vmatprep.subr.mxu0 0.0
    %134 = vmatpush1.msra.mxu0 %v51
    %135 = vmatprep.subr.mxu0 0.0
    %136 = vmatpush1.msra.mxu0 %v52
    %137 = vmatprep.subr.mxu0 0.0
    %138 = vmatpush1.msra.mxu0 %v53
    %139 = vmatprep.subr.mxu0 0.0
    %140 = vmatpush1.msra.mxu0 %v54
    %141 = vmatprep.subr.mxu0 0.0
    %142 = vmatpush1.msra.mxu0 %v55
    %143 = vmatprep.subr.mxu0 0.0
    %144 = vmatpush1.msra.mxu0 %v56
    %145 = vmatprep.subr.mxu0 0.0
    %146 = vmatpush1.msra.mxu0 %v57
    %147 = vmatprep.subr.mxu0 0.0
    %148 = vmatpush1.msra.mxu0 %v58
    %149 = vmatprep.mubr.f32.mxu0 %v82
    %150 = vmatmul.mubr.f32.gmra.mrb[0].mxu0 %v81
    %v151 = vpop.f32.mrb[0].mxu0
    %v152 = vadd.f32 %v60, %v151
    %v153 = vpop.f32.mrb[0].mxu0
    %154 = vdwg.mxu0
    %v155 = vmax.f32 %v152, 0.0
    %v156 = vmin.f32 %v155, 6.0
    %v157 = vld [vmem:[%s2] sm:$0x1]
    %s158 = sld [smem:[#allocation3]]
    %v159 = vstv %s158
    %vm160 = vcmask 130048
    %v162 = vsel %vm160, %v157, 0
    %v165 = vsel %vm160, %v156, 0
    %167 = vmatprep.subr.mxu0 0.0
    %168 = vmatpush1.xpose.msra.mxu0 %v165
    %169 = vmatprep.subr.mxu0 0.0
    %170 = vmatpush1.xpose.msra.mxu0 0.0
    %171 = vmatprep.subr.mxu0 0.0
    %172 = vmatpush1.xpose.msra.mxu0 0.0
    %173 = vmatprep.subr.mxu0 0.0
    %174 = vmatpush1.xpose.msra.mxu0 0.0
    %175 = vmatprep.subr.mxu0 0.0
    %176 = vmatpush1.xpose.msra.mxu0 0.0
    %177 = vmatprep.subr.mxu0 0.0
    %178 = vmatpush1.xpose.msra.mxu0 0.0
    %179 = vmatprep.subr.mxu0 0.0
    %180 = vmatpush1.xpose.msra.mxu0 0.0
    %181 = vmatprep.subr.mxu0 0.0
    %182 = vmatpush1.xpose.msra.mxu0 0.0
    %183 = vmatprep.subr.mxu0 0.0
    %184 = vmatpush1.xpose.msra.mxu0 0.0
    %185 = vmatprep.subr.mxu0 0.0
    %186 = vmatpush1.xpose.msra.mxu0 0.0
    %187 = vmatprep.subr.mxu0 0.0
    %188 = vmatpush1.xpose.msra.mxu0 0.0
    %189 = vmatprep.subr.mxu0 0.0
    %190 = vmatpush1.xpose.msra.mxu0 0.0
    %191 = vmatprep.subr.mxu0 0.0
    %192 = vmatpush1.xpose.msra.mxu0 0.0
    %193 = vmatprep.subr.mxu0 0.0
    %194 = vmatpush1.xpose.msra.mxu0 0.0
    %195 = vmatprep.subr.mxu0 0.0
    %196 = vmatpush1.xpose.msra.mxu0 0.0
    %197 = vmatprep.subr.mxu0 0.0
    %198 = vmatpush1.xpose.msra.mxu0 0.0
    %199 = vmatprep.subr.mxu0 0.0
    %200 = vmatpush1.xpose.msra.mxu0 0.0
    %201 = vmatprep.subr.mxu0 0.0
    %202 = vmatpush1.xpose.msra.mxu0 0.0
    %203 = vmatprep.subr.mxu0 0.0
    %204 = vmatpush1.xpose.msra.mxu0 0.0
    %205 = vmatprep.subr.mxu0 0.0
    %206 = vmatpush1.xpose.msra.mxu0 0.0
    %207 = vmatprep.subr.mxu0 0.0
    %208 = vmatpush1.xpose.msra.mxu0 0.0
    %209 = vmatprep.subr.mxu0 0.0
    %210 = vmatpush1.xpose.msra.mxu0 0.0
    %211 = vmatprep.subr.mxu0 0.0
    %212 = vmatpush1.xpose.msra.mxu0 0.0
    %213 = vmatprep.subr.mxu0 0.0
    %214 = vmatpush1.xpose.msra.mxu0 0.0
    %215 = vmatprep.subr.mxu0 0.0
    %216 = vmatpush1.xpose.msra.mxu0 0.0
    %217 = vmatprep.subr.mxu0 0.0
    %218 = vmatpush1.xpose.msra.mxu0 0.0
    %219 = vmatprep.subr.mxu0 0.0
    %220 = vmatpush1.xpose.msra.mxu0 0.0
    %221 = vmatprep.subr.mxu0 0.0
    %222 = vmatpush1.xpose.msra.mxu0 0.0
    %223 = vmatprep.subr.mxu0 0.0
    %224 = vmatpush1.xpose.msra.mxu0 0.0
    %225 = vmatprep.subr.mxu0 0.0
    %226 = vmatpush1.xpose.msra.mxu0 0.0
    %227 = vmatprep.subr.mxu0 0.0
    %228 = vmatpush1.xpose.msra.mxu0 0.0
    %229 = vmatprep.subr.mxu0 0.0
    %230 = vmatpush1.xpose.msra.mxu0 0.0
    %231 = vmatprep.mubr.f32.mxu0 0.0
    %232 = vmatmul.mubr.f32.gmra.mrb[0].mxu0 %v162
    %v233 = vpop.f32.mrb[0].mxu0
    %v234 = vadd.f32 %v159, %v233
    %v235 = vpop.f32.mrb[0].mxu0
    %236 = vdwg.mxu0
    %vm237 = vcmask 57344
    %238 = vst.msk [vmem:[#allocation4] sm:$0x1] %vm237, %v234
    // Predicated region
    $region22: #{tpu_custom_call.1} parent=1 // pred_check
      _
    $region23: #{tpu_custom_call.1} parent=1 // pred_check_branch
      %240 = sbr.rel (0) target = $region25
    $region24: #{tpu_custom_call.1} parent=1 // pred_region
      %s242 = ssub.s32 16, 16
      %243 = vsyncadd [#allocation5], %s242
      %s245 = sshll.u32 [#allocation4], 4
      %s246 = int_to_ptr.vmem [resolvable:$true] %s245
      %248 = dma.vmem_to_hbm [thread:$0]  %s246, 16, %s5, [#allocation5]
    $region25: #{tpu_custom_call.1} parent=1 // pred_fallthru
      _
    // Predicated region
    $region26: #{tpu_custom_call.1} parent=1 // pred_check
      _
    $region27: #{tpu_custom_call.1} parent=1 // pred_check_branch
      %250 = sbr.rel (0) target = $region29
    $region28: #{tpu_custom_call.1} parent=1 // pred_region
      %251 = dma.done [#allocation5], 16
    $region29: #{tpu_custom_call.1} parent=1 // pred_fallthru
      _
    %252 = vsyncpa [#allocation5], 1

</llo_original>
